<compile_context>
chip_gen: v7x
topology: tpu7x:2x2x1
jax: 0.10.0
libtpu: 0.0.40
codegen_flags: <defaults>
</compile_context>

<pallas_src>
import functools

import jax
import jax.numpy as jnp
from jax.experimental import pallas as pl
from jax.experimental.pallas import tpu as pltpu

_LANE = 128
_SUBLANE = 8


def _round_up(x, m):
    return ((x + m - 1) // m) * m


def _generator_kernel(x_ref,
                      w1_ref, b1_ref,
                      w2_ref, b2_ref,
                      w3_ref, b3_ref,
                      w4_ref, b4_ref,
                      out_ref):
    # Layer 1 (concat already fused in the wrapper: x = [z | condition]).
    h = jnp.dot(x_ref[...], w1_ref[...],
                preferred_element_type=jnp.float32) + b1_ref[...]
    h = jnp.maximum(h, 0.0).astype(jnp.bfloat16)

    # Layer 2
    h = jnp.dot(h, w2_ref[...],
                preferred_element_type=jnp.float32) + b2_ref[...]
    h = jnp.maximum(h, 0.0).astype(jnp.bfloat16)

    # Layer 3
    h = jnp.dot(h, w3_ref[...],
                preferred_element_type=jnp.float32) + b3_ref[...]
    h = jnp.maximum(h, 0.0).astype(jnp.bfloat16)

    # Layer 4 (no activation). Weight/bias are zero-padded to 128 lanes so this
    # store is a lane-dense, unmasked vst.
    y = jnp.dot(h, w4_ref[...],
                preferred_element_type=jnp.float32) + b4_ref[...]
    out_ref[...] = y.astype(out_ref.dtype)


def _choose_tile(padded_rows):
    """Largest power-of-two row tile (<=1024) dividing `padded_rows`.

    For large batches that would otherwise be a single grid block, prefer a
    half-size tile so the "parallel" batch axis has >=2 blocks and can shard
    across both TensorCores on v7x (no-op on v5e/v6e).
    """
    for tm in (1024, 512, 256, 128, 64, 32, 16, 8):
        if padded_rows % tm == 0:
            if padded_rows == tm and tm >= 512:
                continue
            return tm
    return 8


@functools.partial(jax.jit, static_argnames=("out_dim",))
def _generator_forward_padded(zc, params, out_dim):
    rows, in_dim = zc.shape
    out_pad = params["w4"].shape[1]          # multiple of 128

    TM = _choose_tile(rows)
    n_blocks = rows // TM

    def row_spec(cols):
        return pl.BlockSpec((TM, cols), lambda i: (i, 0))

    # Weights/biases pinned to block (0, 0): DMA'd once, VMEM-resident across
    # the whole batch grid.  (Single-buffering them via pl.Buffered(1) would
    # shave ~0.5 MiB more VMEM; omitted to keep lowering maximally portable.)
    def const_spec(shape):
        return pl.BlockSpec(shape, lambda i: (0, 0))

    args = (zc,
            params["w1"], params["b1"],
            params["w2"], params["b2"],
            params["w3"], params["b3"],
            params["w4"], params["b4"])

    in_specs = [row_spec(in_dim)] + [const_spec(a.shape) for a in args[1:]]

    out = pl.pallas_call(
        _generator_kernel,
        # f32 output to match the PyTorch module; switch to bf16 here to halve
        # writeback bytes if downstream consumers accept it.
        out_shape=jax.ShapeDtypeStruct((rows, out_pad), jnp.float32),
        grid=(n_blocks,),
        in_specs=in_specs,
        out_specs=row_spec(out_pad),
        compiler_params=pltpu.CompilerParams(
            dimension_semantics=("parallel",),   # 2 TCs on v7x; no-op elsewhere
            vmem_limit_bytes=32 * 1024 * 1024,   # safe on v7x's 64 MiB VMEM
        ),
    )(*args)

    return out[:, :out_dim]


def generator_forward(z, condition, params, out_dim):
    batch = z.shape[0]
    # Fuse torch.cat into a single bf16 input stream -> one layer-1 matmul.
    zc = jnp.concatenate([z, condition], axis=1).astype(jnp.bfloat16)
    padded = _round_up(batch, _SUBLANE)
    if padded != batch:
        # Only the ragged tail (<= 7 rows) is padded; TM always divides the
        # 8-aligned row count, so no whole-tile padding is ever needed.
        zc = jnp.pad(zc, ((0, padded - batch), (0, 0)))
    out = _generator_forward_padded(zc, params, out_dim)
    return out[:batch]


def init_generator_params(key, z_dim, condition_dim, output_dim):
    """Init mirroring nn.Linear's default U(-1/sqrt(fan_in), +1/sqrt(fan_in)).

    Weights are stored transposed (in_features, out_features) in bf16; fc1's
    weight is a single merged (z_dim+condition_dim, 128) matrix (concat fused
    in the wrapper); fc4's weight/bias are zero-padded to 128 output columns
    so the kernel's final store is lane-dense. Biases are (1, out) f32.
    """
    dims = [z_dim + condition_dim, 128, 256, 512, output_dim]
    out_pad = _round_up(output_dim, _LANE)
    params = {}
    keys = jax.random.split(key, 8)
    for i in range(4):
        fan_in, fan_out = dims[i], dims[i + 1]
        k = 1.0 / jnp.sqrt(jnp.float32(fan_in))
        w = jax.random.uniform(keys[2 * i], (fan_in, fan_out),
                               minval=-k, maxval=k, dtype=jnp.float32)
        b = jax.random.uniform(keys[2 * i + 1], (1, fan_out),
                               minval=-k, maxval=k, dtype=jnp.float32)
        if i == 3:
            w = jnp.pad(w, ((0, 0), (0, out_pad - fan_out)))
            b = jnp.pad(b, ((0, 0), (0, out_pad - fan_out)))
        params[f"w{i + 1}"] = w.astype(jnp.bfloat16)
        params[f"b{i + 1}"] = b
    return params


def _reference_forward(z, condition, params, out_dim):
    # Same bf16-weight / f32-accumulate recipe, in plain JAX.
    x = jnp.concatenate([z, condition], axis=1).astype(jnp.bfloat16)
    h = jnp.dot(x, params["w1"], preferred_element_type=jnp.float32) + params["b1"]
    h = jnp.maximum(h, 0.0).astype(jnp.bfloat16)
    h = jnp.dot(h, params["w2"], preferred_element_type=jnp.float32) + params["b2"]
    h = jnp.maximum(h, 0.0).astype(jnp.bfloat16)
    h = jnp.dot(h, params["w3"], preferred_element_type=jnp.float32) + params["b3"]
    h = jnp.maximum(h, 0.0).astype(jnp.bfloat16)
    y = jnp.dot(h, params["w4"], preferred_element_type=jnp.float32) + params["b4"]
    return y[:, :out_dim]


if __name__ == "__main__":
    key = jax.random.PRNGKey(0)
    k_params, k_z, k_c = jax.random.split(key, 3)

    batch = 8
    z_dim = 16
    condition_dim = 8
    output_dim = 10

    params = init_generator_params(k_params, z_dim, condition_dim, output_dim)
    z = jax.random.normal(k_z, (batch, z_dim), dtype=jnp.float32)
    condition = jax.random.normal(k_c, (batch, condition_dim), dtype=jnp.float32)

    out = generator_forward(z, condition, params, output_dim)
    out = jax.block_until_ready(out)

    ref = _reference_forward(z, condition, params, output_dim)
    assert out.shape == (batch, output_dim)
    assert jnp.allclose(out, ref, atol=1e-2, rtol=1e-2), "mismatch vs JAX reference"

    print("KERNEL_OK")
</pallas_src>

<mosaic_0001>
module attributes {stable_mosaic.version = 11 : i64} {
  func.func @_generator_kernel(%arg0: i32, %arg1: memref<8x24xbf16, #tpu.memory_space<vmem>>, %arg2: memref<24x128xbf16, #tpu.memory_space<vmem>>, %arg3: memref<1x128xf32, #tpu.memory_space<vmem>>, %arg4: memref<128x256xbf16, #tpu.memory_space<vmem>>, %arg5: memref<1x256xf32, #tpu.memory_space<vmem>>, %arg6: memref<256x512xbf16, #tpu.memory_space<vmem>>, %arg7: memref<1x512xf32, #tpu.memory_space<vmem>>, %arg8: memref<512x128xbf16, #tpu.memory_space<vmem>>, %arg9: memref<1x128xf32, #tpu.memory_space<vmem>>, %arg10: memref<8x128xf32, #tpu.memory_space<vmem>>) attributes {dimension_semantics = [#tpu.dimension_semantics<parallel>], iteration_bounds = array<i64: 1>, scalar_prefetch = 0 : i64, scratch_operands = 0 : i64, tpu.core_type = #tpu.core_type<tc>, window_params = [{transform_indices = @transform_0, window_bounds = array<i64: 8, 24>}, {pipeline_mode = #tpu.pipeline_mode<synchronous>, transform_indices = @transform_1, window_bounds = array<i64: 24, 128>}, {pipeline_mode = #tpu.pipeline_mode<synchronous>, transform_indices = @transform_2, window_bounds = array<i64: 1, 128>}, {pipeline_mode = #tpu.pipeline_mode<synchronous>, transform_indices = @transform_3, window_bounds = array<i64: 128, 256>}, {pipeline_mode = #tpu.pipeline_mode<synchronous>, transform_indices = @transform_4, window_bounds = array<i64: 1, 256>}, {pipeline_mode = #tpu.pipeline_mode<synchronous>, transform_indices = @transform_5, window_bounds = array<i64: 256, 512>}, {pipeline_mode = #tpu.pipeline_mode<synchronous>, transform_indices = @transform_6, window_bounds = array<i64: 1, 512>}, {pipeline_mode = #tpu.pipeline_mode<synchronous>, transform_indices = @transform_7, window_bounds = array<i64: 512, 128>}, {pipeline_mode = #tpu.pipeline_mode<synchronous>, transform_indices = @transform_8, window_bounds = array<i64: 1, 128>}, {transform_indices = @transform_9, window_bounds = array<i64: 8, 128>}]} {
    %c0 = arith.constant 0 : index
    %c0_0 = arith.constant 0 : index
    %0 = vector.load %arg1[%c0, %c0_0] : memref<8x24xbf16, #tpu.memory_space<vmem>>, vector<8x24xbf16>
    %c0_1 = arith.constant 0 : index
    %c0_2 = arith.constant 0 : index
    %1 = vector.load %arg2[%c0_1, %c0_2] : memref<24x128xbf16, #tpu.memory_space<vmem>>, vector<24x128xbf16>
    %cst = arith.constant dense<0.000000e+00> : vector<8x128xf32>
    %2 = tpu.matmul %0, %1, %cst {dimension_numbers = #tpu.dot_dimension_numbers<[1], [0], [0], [1], [0, 0, 1, 1], [], []>} : vector<8x24xbf16>, vector<24x128xbf16>, vector<8x128xf32> -> vector<8x128xf32>
    %c0_3 = arith.constant 0 : index
    %c0_4 = arith.constant 0 : index
    %3 = vector.load %arg3[%c0_3, %c0_4] : memref<1x128xf32, #tpu.memory_space<vmem>>, vector<1x128xf32>
    %4 = vector.broadcast %3 : vector<1x128xf32> to vector<8x128xf32>
    %5 = arith.addf %2, %4 : vector<8x128xf32>
    %cst_5 = arith.constant 0.000000e+00 : f32
    %6 = vector.broadcast %cst_5 : f32 to vector<8x128xf32>
    %7 = arith.maximumf %5, %6 : vector<8x128xf32>
    %8 = arith.truncf %7 : vector<8x128xf32> to vector<8x128xbf16>
    %c0_6 = arith.constant 0 : index
    %c0_7 = arith.constant 0 : index
    %9 = vector.load %arg4[%c0_6, %c0_7] : memref<128x256xbf16, #tpu.memory_space<vmem>>, vector<128x256xbf16>
    %cst_8 = arith.constant dense<0.000000e+00> : vector<8x256xf32>
    %10 = tpu.matmul %8, %9, %cst_8 {dimension_numbers = #tpu.dot_dimension_numbers<[1], [0], [0], [1], [0, 0, 1, 1], [], []>} : vector<8x128xbf16>, vector<128x256xbf16>, vector<8x256xf32> -> vector<8x256xf32>
    %c0_9 = arith.constant 0 : index
    %c0_10 = arith.constant 0 : index
    %11 = vector.load %arg5[%c0_9, %c0_10] : memref<1x256xf32, #tpu.memory_space<vmem>>, vector<1x256xf32>
    %12 = vector.broadcast %11 : vector<1x256xf32> to vector<8x256xf32>
    %13 = arith.addf %10, %12 : vector<8x256xf32>
    %cst_11 = arith.constant 0.000000e+00 : f32
    %14 = vector.broadcast %cst_11 : f32 to vector<8x256xf32>
    %15 = arith.maximumf %13, %14 : vector<8x256xf32>
    %16 = arith.truncf %15 : vector<8x256xf32> to vector<8x256xbf16>
    %c0_12 = arith.constant 0 : index
    %c0_13 = arith.constant 0 : index
    %17 = vector.load %arg6[%c0_12, %c0_13] : memref<256x512xbf16, #tpu.memory_space<vmem>>, vector<256x512xbf16>
    %cst_14 = arith.constant dense<0.000000e+00> : vector<8x512xf32>
    %18 = tpu.matmul %16, %17, %cst_14 {dimension_numbers = #tpu.dot_dimension_numbers<[1], [0], [0], [1], [0, 0, 1, 1], [], []>} : vector<8x256xbf16>, vector<256x512xbf16>, vector<8x512xf32> -> vector<8x512xf32>
    %c0_15 = arith.constant 0 : index
    %c0_16 = arith.constant 0 : index
    %19 = vector.load %arg7[%c0_15, %c0_16] : memref<1x512xf32, #tpu.memory_space<vmem>>, vector<1x512xf32>
    %20 = vector.broadcast %19 : vector<1x512xf32> to vector<8x512xf32>
    %21 = arith.addf %18, %20 : vector<8x512xf32>
    %cst_17 = arith.constant 0.000000e+00 : f32
    %22 = vector.broadcast %cst_17 : f32 to vector<8x512xf32>
    %23 = arith.maximumf %21, %22 : vector<8x512xf32>
    %24 = arith.truncf %23 : vector<8x512xf32> to vector<8x512xbf16>
    %c0_18 = arith.constant 0 : index
    %c0_19 = arith.constant 0 : index
    %25 = vector.load %arg8[%c0_18, %c0_19] : memref<512x128xbf16, #tpu.memory_space<vmem>>, vector<512x128xbf16>
    %cst_20 = arith.constant dense<0.000000e+00> : vector<8x128xf32>
    %26 = tpu.matmul %24, %25, %cst_20 {dimension_numbers = #tpu.dot_dimension_numbers<[1], [0], [0], [1], [0, 0, 1, 1], [], []>} : vector<8x512xbf16>, vector<512x128xbf16>, vector<8x128xf32> -> vector<8x128xf32>
    %c0_21 = arith.constant 0 : index
    %c0_22 = arith.constant 0 : index
    %27 = vector.load %arg9[%c0_21, %c0_22] : memref<1x128xf32, #tpu.memory_space<vmem>>, vector<1x128xf32>
    %28 = vector.broadcast %27 : vector<1x128xf32> to vector<8x128xf32>
    %29 = arith.addf %26, %28 : vector<8x128xf32>
    %c0_23 = arith.constant 0 : index
    %c0_24 = arith.constant 0 : index
    %30 = vector.load %arg10[%c0_23, %c0_24] : memref<8x128xf32, #tpu.memory_space<vmem>>, vector<8x128xf32>
    tpu.vector_store %arg10[%c0_23, %c0_24], %29 {strides = array<i32>} : memref<8x128xf32, #tpu.memory_space<vmem>>, vector<8x128xf32>,
    return
  }
  func.func @transform_0(%arg0: i32) -> (i32, i32) {
    %c0_i32 = arith.constant 0 : i32
    %c0_i32_0 = arith.constant 0 : i32
    return %arg0, %c0_i32 : i32, i32
  }
  func.func @transform_1(%arg0: i32) -> (i32, i32) {
    %c0_i32 = arith.constant 0 : i32
    %c0_i32_0 = arith.constant 0 : i32
    %c0_i32_1 = arith.constant 0 : i32
    return %c0_i32, %c0_i32_0 : i32, i32
  }
  func.func @transform_2(%arg0: i32) -> (i32, i32) {
    %c0_i32 = arith.constant 0 : i32
    %c0_i32_0 = arith.constant 0 : i32
    %c0_i32_1 = arith.constant 0 : i32
    return %c0_i32, %c0_i32_0 : i32, i32
  }
  func.func @transform_3(%arg0: i32) -> (i32, i32) {
    %c0_i32 = arith.constant 0 : i32
    %c0_i32_0 = arith.constant 0 : i32
    %c0_i32_1 = arith.constant 0 : i32
    return %c0_i32, %c0_i32_0 : i32, i32
  }
  func.func @transform_4(%arg0: i32) -> (i32, i32) {
    %c0_i32 = arith.constant 0 : i32
    %c0_i32_0 = arith.constant 0 : i32
    %c0_i32_1 = arith.constant 0 : i32
    return %c0_i32, %c0_i32_0 : i32, i32
  }
  func.func @transform_5(%arg0: i32) -> (i32, i32) {
    %c0_i32 = arith.constant 0 : i32
    %c0_i32_0 = arith.constant 0 : i32
    %c0_i32_1 = arith.constant 0 : i32
    return %c0_i32, %c0_i32_0 : i32, i32
  }
  func.func @transform_6(%arg0: i32) -> (i32, i32) {
    %c0_i32 = arith.constant 0 : i32
    %c0_i32_0 = arith.constant 0 : i32
    %c0_i32_1 = arith.constant 0 : i32
    return %c0_i32, %c0_i32_0 : i32, i32
  }
  func.func @transform_7(%arg0: i32) -> (i32, i32) {
    %c0_i32 = arith.constant 0 : i32
    %c0_i32_0 = arith.constant 0 : i32
    %c0_i32_1 = arith.constant 0 : i32
    return %c0_i32, %c0_i32_0 : i32, i32
  }
  func.func @transform_8(%arg0: i32) -> (i32, i32) {
    %c0_i32 = arith.constant 0 : i32
    %c0_i32_0 = arith.constant 0 : i32
    %c0_i32_1 = arith.constant 0 : i32
    return %c0_i32, %c0_i32_0 : i32, i32
  }
  func.func @transform_9(%arg0: i32) -> (i32, i32) {
    %c0_i32 = arith.constant 0 : i32
    %c0_i32_0 = arith.constant 0 : i32
    return %arg0, %c0_i32 : i32, i32
  }
}

</mosaic_0001>

<llo_original>
// kernel: _generator_forward_padded.1
$region0: #{_generator_forward_padded.1}
  #allocation0 [shape = 'u32[]', space=smem, size = 0x4, offset = 0x4, fixed_abs, tag = 'smem constant byte address 0x4 - core index']
  #allocation1 [shape = 'u32[144,128]{1,0:T(1,128)}', space=vmem, size = 0x12000, scoped, tag = 'internal scratch']
  %s0 = inlined_call_operand.hbm [shape: bf16[8,24], index: 0, kind: input, shape index: {}]
  %s1 = inlined_call_operand.vmem [shape: bf16[24,128], index: 1, kind: input, shape index: {}]
  %s2 = inlined_call_operand.hbm [shape: f32[1,128], index: 2, kind: input, shape index: {}]
  %s3 = inlined_call_operand.hbm [shape: bf16[128,256], index: 3, kind: input, shape index: {}]
  %s4 = inlined_call_operand.vmem [shape: f32[1,256], index: 4, kind: input, shape index: {}]
  %s5 = inlined_call_operand.hbm [shape: bf16[256,512], index: 5, kind: input, shape index: {}]
  %s6 = inlined_call_operand.vmem [shape: f32[1,512], index: 6, kind: input, shape index: {}]
  %s7 = inlined_call_operand.hbm [shape: bf16[512,128], index: 7, kind: input, shape index: {}]
  %s8 = inlined_call_operand.hbm [shape: f32[1,128], index: 8, kind: input, shape index: {}]
  %s9 = inlined_call_operand.hbm [shape: f32[8,128], index: 9, kind: output, shape index: {}]
  %s10 = sld [smem:[#allocation0]]
  $region70: #{_generator_forward_padded.1} parent=0
    _
  %s12 = ssub.s32 1, %s10
  %s13 = scalar_select 0, %s12, %s10
  $region1: #{_generator_forward_padded.1} parent=0
    #allocation2 [shape = 'u8[2048]{0}', space=vmem, size = 0x800, scoped, tag = 'input window, operand 0, single buffered']
    #allocation3 [shape = 's32[1]{0}', space=sflag, size = 0x4, scoped, tag = 'scoped memory for _generator_forward_padded.1']
    #allocation4 [shape = 's32[1]{0}', space=sflag, size = 0x4, scoped, tag = 'scoped memory for _generator_forward_padded.1']
    #allocation5 [shape = 'u8[512]{0}', space=vmem, size = 0x400, scoped, tag = 'input window, operand 2, single buffered']
    #allocation6 [shape = 's32[1]{0}', space=sflag, size = 0x4, scoped, tag = 'scoped memory for _generator_forward_padded.1']
    #allocation7 [shape = 'u8[65536]{0}', space=vmem, size = 0x10000, scoped, tag = 'input window, operand 3, single buffered']
    #allocation8 [shape = 'u8[262144]{0}', space=vmem, size = 0x40000, scoped, tag = 'input window, operand 5, single buffered']
    #allocation9 [shape = 's32[1]{0}', space=sflag, size = 0x4, scoped, tag = 'scoped memory for _generator_forward_padded.1']
    #allocation10 [shape = 'u8[131072]{0}', space=vmem, size = 0x20000, scoped, tag = 'input window, operand 7, single buffered']
    #allocation11 [shape = 'u8[512]{0}', space=vmem, size = 0x400, scoped, tag = 'input window, operand 8, single buffered']
    #allocation12 [shape = 's32[1]{0}', space=sflag, size = 0x4, scoped, tag = 'scoped memory for _generator_forward_padded.1']
    #allocation13 [shape = 'u8[4096]{0}', space=vmem, size = 0x1000, scoped, tag = 'output window, operand 0, single buffered']
    %14 = vsyncpa [#allocation3], 0
    %15 = vsyncpa [#allocation6], 0
    %16 = vsyncpa [#allocation9], 0
    %17 = vsyncpa [#allocation12], 0
    %18 = vsyncpa [#allocation4], 0
    // Predicated region
    $region2: #{_generator_forward_padded.1} parent=1 // pred_check
      _
    $region3: #{_generator_forward_padded.1} parent=1 // pred_check_branch
      %20 = sbr.rel (0) target = $region5
    $region4: #{_generator_forward_padded.1} parent=1 // pred_region
      %s22 = ssub.s32 64, 64
      %23 = vsyncadd [#allocation3], %s22
      %s25 = sshll.u32 [#allocation2], 4
      %s26 = int_to_ptr.vmem [resolvable:$true] %s25
      %28 = dma.hbm_to_vmem [thread:$0]  %s0, 64, %s26, [#allocation3]
    $region5: #{_generator_forward_padded.1} parent=1 // pred_fallthru
      _
    // Predicated region
    $region6: #{_generator_forward_padded.1} parent=1 // pred_check
      _
    $region7: #{_generator_forward_padded.1} parent=1 // pred_check_branch
      %30 = sbr.rel (0) target = $region9
    $region8: #{_generator_forward_padded.1} parent=1 // pred_region
      _
    $region9: #{_generator_forward_padded.1} parent=1 // pred_fallthru
      _
    // Predicated region
    $region10: #{_generator_forward_padded.1} parent=1 // pred_check
      _
    $region11: #{_generator_forward_padded.1} parent=1 // pred_check_branch
      %32 = sbr.rel (0) target = $region13
    $region12: #{_generator_forward_padded.1} parent=1 // pred_region
      %s34 = ssub.s32 16, 16
      %35 = vsyncadd [#allocation6], %s34
      %s37 = sshll.u32 [#allocation5], 4
      %s38 = int_to_ptr.vmem [resolvable:$true] %s37
      %40 = dma.hbm_to_vmem [thread:$0]  %s2, 16, %s38, [#allocation6]
    $region13: #{_generator_forward_padded.1} parent=1 // pred_fallthru
      _
    // Predicated region
    $region14: #{_generator_forward_padded.1} parent=1 // pred_check
      _
    $region15: #{_generator_forward_padded.1} parent=1 // pred_check_branch
      %42 = sbr.rel (0) target = $region17
    $region16: #{_generator_forward_padded.1} parent=1 // pred_region
      %s44 = ssub.s32 2048, 2048
      %45 = vsyncadd [#allocation6], %s44
      %s46 = sshll.u32 [#allocation7], 4
      %s47 = int_to_ptr.vmem [resolvable:$true] %s46
      %52 = dma.hbm_to_vmem [thread:$0]  %s3, 2048, %s47, [#allocation6], 128, 128, 8
    $region17: #{_generator_forward_padded.1} parent=1 // pred_fallthru
      _
    // Predicated region
    $region18: #{_generator_forward_padded.1} parent=1 // pred_check
      _
    $region19: #{_generator_forward_padded.1} parent=1 // pred_check_branch
      %54 = sbr.rel (0) target = $region21
    $region20: #{_generator_forward_padded.1} parent=1 // pred_region
      _
    $region21: #{_generator_forward_padded.1} parent=1 // pred_fallthru
      _
    // Predicated region
    $region22: #{_generator_forward_padded.1} parent=1 // pred_check
      _
    $region23: #{_generator_forward_padded.1} parent=1 // pred_check_branch
      %56 = sbr.rel (0) target = $region25
    $region24: #{_generator_forward_padded.1} parent=1 // pred_region
      %s58 = ssub.s32 8192, 8192
      %59 = vsyncadd [#allocation9], %s58
      %s60 = sshll.u32 [#allocation8], 4
      %s61 = int_to_ptr.vmem [resolvable:$true] %s60
      %66 = dma.hbm_to_vmem [thread:$0]  %s5, 8192, %s61, [#allocation9], 256, 256, 16
    $region25: #{_generator_forward_padded.1} parent=1 // pred_fallthru
      _
    // Predicated region
    $region26: #{_generator_forward_padded.1} parent=1 // pred_check
      _
    $region27: #{_generator_forward_padded.1} parent=1 // pred_check_branch
      %68 = sbr.rel (0) target = $region29
    $region28: #{_generator_forward_padded.1} parent=1 // pred_region
      _
    $region29: #{_generator_forward_padded.1} parent=1 // pred_fallthru
      _
    // Predicated region
    $region30: #{_generator_forward_padded.1} parent=1 // pred_check
      _
    $region31: #{_generator_forward_padded.1} parent=1 // pred_check_branch
      %70 = sbr.rel (0) target = $region33
    $region32: #{_generator_forward_padded.1} parent=1 // pred_region
      %s72 = ssub.s32 4096, 4096
      %73 = vsyncadd [#allocation9], %s72
      %s74 = sshll.u32 [#allocation10], 4
      %s75 = int_to_ptr.vmem [resolvable:$true] %s74
      %80 = dma.hbm_to_vmem [thread:$0]  %s7, 4096, %s75, [#allocation9], 64, 64, 4
    $region33: #{_generator_forward_padded.1} parent=1 // pred_fallthru
      _
    // Predicated region
    $region34: #{_generator_forward_padded.1} parent=1 // pred_check
      _
    $region35: #{_generator_forward_padded.1} parent=1 // pred_check_branch
      %82 = sbr.rel (0) target = $region37
    $region36: #{_generator_forward_padded.1} parent=1 // pred_region
      %s84 = ssub.s32 16, 16
      %85 = vsyncadd [#allocation12], %s84
      %s87 = sshll.u32 [#allocation11], 4
      %s88 = int_to_ptr.vmem [resolvable:$true] %s87
      %90 = dma.hbm_to_vmem [thread:$0]  %s8, 16, %s88, [#allocation12]
    $region37: #{_generator_forward_padded.1} parent=1 // pred_fallthru
      _
    // Predicated region
    $region38: #{_generator_forward_padded.1} parent=1 // pred_check
      _
    $region39: #{_generator_forward_padded.1} parent=1 // pred_check_branch
      %92 = sbr.rel (0) target = $region41
    $region40: #{_generator_forward_padded.1} parent=1 // pred_region
      %93 = dma.done [#allocation3], 64
    $region41: #{_generator_forward_padded.1} parent=1 // pred_fallthru
      _
    // Predicated region
    $region42: #{_generator_forward_padded.1} parent=1 // pred_check
      _
    $region43: #{_generator_forward_padded.1} parent=1 // pred_check_branch
      %95 = sbr.rel (0) target = $region45
    $region44: #{_generator_forward_padded.1} parent=1 // pred_region
      %96 = dma.done [#allocation6], 16
    $region45: #{_generator_forward_padded.1} parent=1 // pred_fallthru
      _
    // Predicated region
    $region46: #{_generator_forward_padded.1} parent=1 // pred_check
      _
    $region47: #{_generator_forward_padded.1} parent=1 // pred_check_branch
      %98 = sbr.rel (0) target = $region49
    $region48: #{_generator_forward_padded.1} parent=1 // pred_region
      %99 = dma.done [#allocation6], 2048
    $region49: #{_generator_forward_padded.1} parent=1 // pred_fallthru
      _
    // Predicated region
    $region50: #{_generator_forward_padded.1} parent=1 // pred_check
      _
    $region51: #{_generator_forward_padded.1} parent=1 // pred_check_branch
      %101 = sbr.rel (0) target = $region53
    $region52: #{_generator_forward_padded.1} parent=1 // pred_region
      %102 = dma.done [#allocation9], 8192
    $region53: #{_generator_forward_padded.1} parent=1 // pred_fallthru
      _
    // Predicated region
    $region54: #{_generator_forward_padded.1} parent=1 // pred_check
      _
    $region55: #{_generator_forward_padded.1} parent=1 // pred_check_branch
      %104 = sbr.rel (0) target = $region57
    $region56: #{_generator_forward_padded.1} parent=1 // pred_region
      %105 = dma.done [#allocation9], 4096
    $region57: #{_generator_forward_padded.1} parent=1 // pred_fallthru
      _
    // Predicated region
    $region58: #{_generator_forward_padded.1} parent=1 // pred_check
      _
    $region59: #{_generator_forward_padded.1} parent=1 // pred_check_branch
      %107 = sbr.rel (0) target = $region61
    $region60: #{_generator_forward_padded.1} parent=1 // pred_region
      %108 = dma.done [#allocation12], 16
    $region61: #{_generator_forward_padded.1} parent=1 // pred_fallthru
      _
    %v110 = vld [vmem:[#allocation2] sm:$0xf]
    %v111 = vld [vmem:[%s1] sm:$0xf]
    %v112 = vld [vmem:[%s1 + $0x4] sm:$0xf]
    %v113 = vld [vmem:[%s1 + $0x8] sm:$0xf]
    %v114 = vld [vmem:[#allocation5] sm:$0x1]
    %v116 = vlaneseq
    %v117 = vshrl.u32 %v116, 7
    %v118 = vsub.s32 0, %v117
    %v119 = vrot.slane %v114, %v118
    %v124 = vunpack.c.l.b16 %v111
    %v125 = vunpack.c.l.b16 %v112
    %v126 = vunpack.c.l.b16 %v113
    %v127 = vpack.c.b16 %v125, %v124
    %v128 = vpack.c.b16 %v126, %v126
    %vm130 = vcmask 195584
    %v132 = vsel %vm130, %v110, 0
    %vm134 = vcmask 1043456
    %v136 = vsel %vm134, %v128, 0
    %138 = vmatprep.subr.bf16.mxu0 0
    %139 = vmatpush1.bf16.msra.mxu0 %v127
    %140 = vmatprep.subr.bf16.mxu0 0
    %141 = vmatpush1.bf16.msra.mxu0 %v136
    %142 = vmatprep.subr.bf16.mxu0 0
    %143 = vmatpush1.bf16.msra.mxu0 0
    %144 = vmatprep.subr.bf16.mxu0 0
    %145 = vmatpush1.bf16.msra.mxu0 0
    %146 = vmatprep.subr.bf16.mxu0 0
    %147 = vmatpush1.bf16.msra.mxu0 0
    %148 = vmatprep.subr.bf16.mxu0 0
    %149 = vmatpush1.bf16.msra.mxu0 0
    %150 = vmatprep.subr.bf16.mxu0 0
    %151 = vmatpush1.bf16.msra.mxu0 0
    %152 = vmatprep.subr.bf16.mxu0 0
    %153 = vmatpush1.bf16.msra.mxu0 0
    %154 = vmatprep.subr.bf16.mxu0 0
    %155 = vmatpush1.bf16.msra.mxu0 0
    %156 = vmatprep.subr.bf16.mxu0 0
    %157 = vmatpush1.bf16.msra.mxu0 0
    %158 = vmatprep.subr.bf16.mxu0 0
    %159 = vmatpush1.bf16.msra.mxu0 0
    %160 = vmatprep.subr.bf16.mxu0 0
    %161 = vmatpush1.bf16.msra.mxu0 0
    %162 = vmatprep.subr.bf16.mxu0 0
    %163 = vmatpush1.bf16.msra.mxu0 0
    %164 = vmatprep.subr.bf16.mxu0 0
    %165 = vmatpush1.bf16.msra.mxu0 0
    %166 = vmatprep.subr.bf16.mxu0 0
    %167 = vmatpush1.bf16.msra.mxu0 0
    %168 = vmatprep.subr.bf16.mxu0 0
    %169 = vmatpush1.bf16.msra.mxu0 0
    %170 = vmatprep.mubr.bf16.mxu0 0
    %171 = vmatmul.mubr.bf16.gmra.mrb[0].mxu0 %v132
    %v172 = vpop.f32.mrb[0].mxu0
    %v173 = vadd.f32 %v119, %v172
    %v174 = vpop.f32.mrb[0].mxu0
    %v175 = vpop.f32.mrb[0].mxu0
    %v176 = vpop.f32.mrb[0].mxu0
    %177 = vdwg.mxu0
    %v178 = vmax.f32 %v173, 0.0
    %v179 = vpack.c.bf16 %v178, %v178
    %v180 = vld [vmem:[#allocation7] sm:$0xff]
    %v181 = vld [vmem:[#allocation7 + $0x8] sm:$0xff]
    %v182 = vld [vmem:[#allocation7 + $0x10] sm:$0xff]
    %v183 = vld [vmem:[#allocation7 + $0x18] sm:$0xff]
    %v184 = vld [vmem:[#allocation7 + $0x20] sm:$0xff]
    %v185 = vld [vmem:[#allocation7 + $0x28] sm:$0xff]
    %v186 = vld [vmem:[#allocation7 + $0x30] sm:$0xff]
    %v187 = vld [vmem:[#allocation7 + $0x38] sm:$0xff]
    %v188 = vld [vmem:[#allocation7 + $0x40] sm:$0xff]
    %v189 = vld [vmem:[#allocation7 + $0x48] sm:$0xff]
    %v190 = vld [vmem:[#allocation7 + $0x50] sm:$0xff]
    %v191 = vld [vmem:[#allocation7 + $0x58] sm:$0xff]
    %v192 = vld [vmem:[#allocation7 + $0x60] sm:$0xff]
    %v193 = vld [vmem:[#allocation7 + $0x68] sm:$0xff]
    %v194 = vld [vmem:[#allocation7 + $0x70] sm:$0xff]
    %v195 = vld [vmem:[#allocation7 + $0x78] sm:$0xff]
    %v196 = vld [vmem:[%s4] sm:$0x3]
    %v198 = vlaneseq
    %v199 = vshrl.u32 %v198, 7
    %v200 = vsub.s32 0, %v199
    %v201 = vrot.slane %v196, %v200
    %v202 = vlaneseq
    %v203 = vshrl.u32 %v202, 7
    %v204 = vsub.s32 1, %v203
    %v205 = vrot.slane %v196, %v204
    %v224 = vunpack.c.l.b16 %v180
    %v225 = vunpack.c.h.b16 %v180
    %v226 = vunpack.c.l.b16 %v181
    %v227 = vunpack.c.h.b16 %v181
    %v228 = vunpack.c.l.b16 %v182
    %v229 = vunpack.c.h.b16 %v182
    %v230 = vunpack.c.l.b16 %v183
    %v231 = vunpack.c.h.b16 %v183
    %v232 = vunpack.c.l.b16 %v184
    %v233 = vunpack.c.h.b16 %v184
    %v234 = vunpack.c.l.b16 %v185
    %v235 = vunpack.c.h.b16 %v185
    %v236 = vunpack.c.l.b16 %v186
    %v237 = vunpack.c.h.b16 %v186
    %v238 = vunpack.c.l.b16 %v187
    %v239 = vunpack.c.h.b16 %v187
    %v240 = vunpack.c.l.b16 %v188
    %v241 = vunpack.c.h.b16 %v188
    %v242 = vunpack.c.l.b16 %v189
    %v243 = vunpack.c.h.b16 %v189
    %v244 = vunpack.c.l.b16 %v190
    %v245 = vunpack.c.h.b16 %v190
    %v246 = vunpack.c.l.b16 %v191
    %v247 = vunpack.c.h.b16 %v191
    %v248 = vunpack.c.l.b16 %v192
    %v249 = vunpack.c.h.b16 %v192
    %v250 = vunpack.c.l.b16 %v193
    %v251 = vunpack.c.h.b16 %v193
    %v252 = vunpack.c.l.b16 %v194
    %v253 = vunpack.c.h.b16 %v194
    %v254 = vunpack.c.l.b16 %v195
    %v255 = vunpack.c.h.b16 %v195
    %v256 = vpack.c.b16 %v226, %v224
    %v257 = vpack.c.b16 %v227, %v225
    %v258 = vpack.c.b16 %v230, %v228
    %v259 = vpack.c.b16 %v231, %v229
    %v260 = vpack.c.b16 %v234, %v232
    %v261 = vpack.c.b16 %v235, %v233
    %v262 = vpack.c.b16 %v238, %v236
    %v263 = vpack.c.b16 %v239, %v237
    %v264 = vpack.c.b16 %v242, %v240
    %v265 = vpack.c.b16 %v243, %v241
    %v266 = vpack.c.b16 %v246, %v244
    %v267 = vpack.c.b16 %v247, %v245
    %v268 = vpack.c.b16 %v250, %v248
    %v269 = vpack.c.b16 %v251, %v249
    %v270 = vpack.c.b16 %v254, %v252
    %v271 = vpack.c.b16 %v255, %v253
    %288 = vmatprep.subr.bf16.mxu0 %v257
    %289 = vmatpush1.bf16.msra.mxu0 %v256
    %290 = vmatprep.subr.bf16.mxu0 %v259
    %291 = vmatpush1.bf16.msra.mxu0 %v258
    %292 = vmatprep.subr.bf16.mxu0 %v261
    %293 = vmatpush1.bf16.msra.mxu0 %v260
    %294 = vmatprep.subr.bf16.mxu0 %v263
    %295 = vmatpush1.bf16.msra.mxu0 %v262
    %296 = vmatprep.subr.bf16.mxu0 %v265
    %297 = vmatpush1.bf16.msra.mxu0 %v264
    %298 = vmatprep.subr.bf16.mxu0 %v267
    %299 = vmatpush1.bf16.msra.mxu0 %v266
    %300 = vmatprep.subr.bf16.mxu0 %v269
    %301 = vmatpush1.bf16.msra.mxu0 %v268
    %302 = vmatprep.subr.bf16.mxu0 %v271
    %303 = vmatpush1.bf16.msra.mxu0 %v270
    %304 = vmatprep.subr.bf16.mxu0 0
    %305 = vmatpush1.bf16.msra.mxu0 0
    %306 = vmatprep.subr.bf16.mxu0 0
    %307 = vmatpush1.bf16.msra.mxu0 0
    %308 = vmatprep.subr.bf16.mxu0 0
    %309 = vmatpush1.bf16.msra.mxu0 0
    %310 = vmatprep.subr.bf16.mxu0 0
    %311 = vmatpush1.bf16.msra.mxu0 0
    %312 = vmatprep.subr.bf16.mxu0 0
    %313 = vmatpush1.bf16.msra.mxu0 0
    %314 = vmatprep.subr.bf16.mxu0 0
    %315 = vmatpush1.bf16.msra.mxu0 0
    %316 = vmatprep.subr.bf16.mxu0 0
    %317 = vmatpush1.bf16.msra.mxu0 0
    %318 = vmatprep.subr.bf16.mxu0 0
    %319 = vmatpush1.bf16.msra.mxu0 0
    %320 = vmatprep.mubr.bf16.mxu0 0
    %321 = vmatmul.mubr.bf16.gmra.mrb[0].mxu0 %v179
    %v322 = vpop.f32.mrb[0].mxu0
    %v323 = vadd.f32 %v201, %v322
    %v324 = vpop.f32.mrb[0].mxu0
    %v325 = vadd.f32 %v205, %v324
    %v326 = vpop.f32.mrb[0].mxu0
    %v327 = vpop.f32.mrb[0].mxu0
    %328 = vdwg.mxu0
    %v329 = vmax.f32 %v323, 0.0
    %v330 = vmax.f32 %v325, 0.0
    %v331 = vpack.c.bf16 %v329, %v329
    %v332 = vpack.c.bf16 %v330, %v330
    %v333 = vld [vmem:[#allocation8] sm:$0xff]
    %v334 = vld [vmem:[#allocation8 + $0x8] sm:$0xff]
    %v335 = vld [vmem:[#allocation8 + $0x10] sm:$0xff]
    %v336 = vld [vmem:[#allocation8 + $0x18] sm:$0xff]
    %v337 = vld [vmem:[#allocation8 + $0x20] sm:$0xff]
    %v338 = vld [vmem:[#allocation8 + $0x28] sm:$0xff]
    %v339 = vld [vmem:[#allocation8 + $0x30] sm:$0xff]
    %v340 = vld [vmem:[#allocation8 + $0x38] sm:$0xff]
    %v341 = vld [vmem:[#allocation8 + $0x40] sm:$0xff]
    %v342 = vld [vmem:[#allocation8 + $0x48] sm:$0xff]
    %v343 = vld [vmem:[#allocation8 + $0x50] sm:$0xff]
    %v344 = vld [vmem:[#allocation8 + $0x58] sm:$0xff]
    %v345 = vld [vmem:[#allocation8 + $0x60] sm:$0xff]
    %v346 = vld [vmem:[#allocation8 + $0x68] sm:$0xff]
    %v347 = vld [vmem:[#allocation8 + $0x70] sm:$0xff]
    %v348 = vld [vmem:[#allocation8 + $0x78] sm:$0xff]
    %v349 = vld [vmem:[#allocation8 + $0x80] sm:$0xff]
    %v350 = vld [vmem:[#allocation8 + $0x88] sm:$0xff]
    %v351 = vld [vmem:[#allocation8 + $0x90] sm:$0xff]
    %v352 = vld [vmem:[#allocation8 + $0x98] sm:$0xff]
    %v353 = vld [vmem:[#allocation8 + $0xa0] sm:$0xff]
    %v354 = vld [vmem:[#allocation8 + $0xa8] sm:$0xff]
    %v355 = vld [vmem:[#allocation8 + $0xb0] sm:$0xff]
    %v356 = vld [vmem:[#allocation8 + $0xb8] sm:$0xff]
    %v357 = vld [vmem:[#allocation8 + $0xc0] sm:$0xff]
    %v358 = vld [vmem:[#allocation8 + $0xc8] sm:$0xff]
    %v359 = vld [vmem:[#allocation8 + $0xd0] sm:$0xff]
    %v360 = vld [vmem:[#allocation8 + $0xd8] sm:$0xff]
    %v361 = vld [vmem:[#allocation8 + $0xe0] sm:$0xff]
    %v362 = vld [vmem:[#allocation8 + $0xe8] sm:$0xff]
    %v363 = vld [vmem:[#allocation8 + $0xf0] sm:$0xff]
    %v364 = vld [vmem:[#allocation8 + $0xf8] sm:$0xff]
    %v365 = vld [vmem:[#allocation8 + $0x100] sm:$0xff]
    %v366 = vld [vmem:[#allocation8 + $0x108] sm:$0xff]
    %v367 = vld [vmem:[#allocation8 + $0x110] sm:$0xff]
    %v368 = vld [vmem:[#allocation8 + $0x118] sm:$0xff]
    %v369 = vld [vmem:[#allocation8 + $0x120] sm:$0xff]
    %v370 = vld [vmem:[#allocation8 + $0x128] sm:$0xff]
    %v371 = vld [vmem:[#allocation8 + $0x130] sm:$0xff]
    %v372 = vld [vmem:[#allocation8 + $0x138] sm:$0xff]
    %v373 = vld [vmem:[#allocation8 + $0x140] sm:$0xff]
    %v374 = vld [vmem:[#allocation8 + $0x148] sm:$0xff]
    %v375 = vld [vmem:[#allocation8 + $0x150] sm:$0xff]
    %v376 = vld [vmem:[#allocation8 + $0x158] sm:$0xff]
    %v377 = vld [vmem:[#allocation8 + $0x160] sm:$0xff]
    %v378 = vld [vmem:[#allocation8 + $0x168] sm:$0xff]
    %v379 = vld [vmem:[#allocation8 + $0x170] sm:$0xff]
    %v380 = vld [vmem:[#allocation8 + $0x178] sm:$0xff]
    %v381 = vld [vmem:[#allocation8 + $0x180] sm:$0xff]
    %v382 = vld [vmem:[#allocation8 + $0x188] sm:$0xff]
    %v383 = vld [vmem:[#allocation8 + $0x190] sm:$0xff]
    %v384 = vld [vmem:[#allocation8 + $0x198] sm:$0xff]
    %v385 = vld [vmem:[#allocation8 + $0x1a0] sm:$0xff]
    %v386 = vld [vmem:[#allocation8 + $0x1a8] sm:$0xff]
    %v387 = vld [vmem:[#allocation8 + $0x1b0] sm:$0xff]
    %v388 = vld [vmem:[#allocation8 + $0x1b8] sm:$0xff]
    %v389 = vld [vmem:[#allocation8 + $0x1c0] sm:$0xff]
    %v390 = vld [vmem:[#allocation8 + $0x1c8] sm:$0xff]
    %v391 = vld [vmem:[#allocation8 + $0x1d0] sm:$0xff]
    %v392 = vld [vmem:[#allocation8 + $0x1d8] sm:$0xff]
    %v393 = vld [vmem:[#allocation8 + $0x1e0] sm:$0xff]
    %v394 = vld [vmem:[#allocation8 + $0x1e8] sm:$0xff]
    %v395 = vld [vmem:[#allocation8 + $0x1f0] sm:$0xff]
    %v396 = vld [vmem:[#allocation8 + $0x1f8] sm:$0xff]
    %v397 = vld [vmem:[%s6] sm:$0xf]
    %v399 = vlaneseq
    %v400 = vshrl.u32 %v399, 7
    %v401 = vsub.s32 0, %v400
    %v402 = vrot.slane %v397, %v401
    %v403 = vlaneseq
    %v404 = vshrl.u32 %v403, 7
    %v405 = vsub.s32 1, %v404
    %v406 = vrot.slane %v397, %v405
    %v407 = vlaneseq
    %v408 = vshrl.u32 %v407, 7
    %v409 = vsub.s32 2, %v408
    %v410 = vrot.slane %v397, %v409
    %v411 = vlaneseq
    %v412 = vshrl.u32 %v411, 7
    %v413 = vsub.s32 3, %v412
    %v414 = vrot.slane %v397, %v413
    %v483 = vunpack.c.l.b16 %v333
    %v484 = vunpack.c.h.b16 %v333
    %v485 = vunpack.c.l.b16 %v334
    %v486 = vunpack.c.h.b16 %v334
    %v487 = vunpack.c.l.b16 %v335
    %v488 = vunpack.c.h.b16 %v335
    %v489 = vunpack.c.l.b16 %v336
    %v490 = vunpack.c.h.b16 %v336
    %v491 = vunpack.c.l.b16 %v337
    %v492 = vunpack.c.h.b16 %v337
    %v493 = vunpack.c.l.b16 %v338
    %v494 = vunpack.c.h.b16 %v338
    %v495 = vunpack.c.l.b16 %v339
    %v496 = vunpack.c.h.b16 %v339
    %v497 = vunpack.c.l.b16 %v340
    %v498 = vunpack.c.h.b16 %v340
    %v499 = vunpack.c.l.b16 %v341
    %v500 = vunpack.c.h.b16 %v341
    %v501 = vunpack.c.l.b16 %v342
    %v502 = vunpack.c.h.b16 %v342
    %v503 = vunpack.c.l.b16 %v343
    %v504 = vunpack.c.h.b16 %v343
    %v505 = vunpack.c.l.b16 %v344
    %v506 = vunpack.c.h.b16 %v344
    %v507 = vunpack.c.l.b16 %v345
    %v508 = vunpack.c.h.b16 %v345
    %v509 = vunpack.c.l.b16 %v346
    %v510 = vunpack.c.h.b16 %v346
    %v511 = vunpack.c.l.b16 %v347
    %v512 = vunpack.c.h.b16 %v347
    %v513 = vunpack.c.l.b16 %v348
    %v514 = vunpack.c.h.b16 %v348
    %v515 = vunpack.c.l.b16 %v349
    %v516 = vunpack.c.h.b16 %v349
    %v517 = vunpack.c.l.b16 %v350
    %v518 = vunpack.c.h.b16 %v350
    %v519 = vunpack.c.l.b16 %v351
    %v520 = vunpack.c.h.b16 %v351
    %v521 = vunpack.c.l.b16 %v352
    %v522 = vunpack.c.h.b16 %v352
    %v523 = vunpack.c.l.b16 %v353
    %v524 = vunpack.c.h.b16 %v353
    %v525 = vunpack.c.l.b16 %v354
    %v526 = vunpack.c.h.b16 %v354
    %v527 = vunpack.c.l.b16 %v355
    %v528 = vunpack.c.h.b16 %v355
    %v529 = vunpack.c.l.b16 %v356
    %v530 = vunpack.c.h.b16 %v356
    %v531 = vunpack.c.l.b16 %v357
    %v532 = vunpack.c.h.b16 %v357
    %v533 = vunpack.c.l.b16 %v358
    %v534 = vunpack.c.h.b16 %v358
    %v535 = vunpack.c.l.b16 %v359
    %v536 = vunpack.c.h.b16 %v359
    %v537 = vunpack.c.l.b16 %v360
    %v538 = vunpack.c.h.b16 %v360
    %v539 = vunpack.c.l.b16 %v361
    %v540 = vunpack.c.h.b16 %v361
    %v541 = vunpack.c.l.b16 %v362
    %v542 = vunpack.c.h.b16 %v362
    %v543 = vunpack.c.l.b16 %v363
    %v544 = vunpack.c.h.b16 %v363
    %v545 = vunpack.c.l.b16 %v364
    %v546 = vunpack.c.h.b16 %v364
    %v547 = vunpack.c.l.b16 %v365
    %v548 = vunpack.c.h.b16 %v365
    %v549 = vunpack.c.l.b16 %v366
    %v550 = vunpack.c.h.b16 %v366
    %v551 = vunpack.c.l.b16 %v367
    %v552 = vunpack.c.h.b16 %v367
    %v553 = vunpack.c.l.b16 %v368
    %v554 = vunpack.c.h.b16 %v368
    %v555 = vunpack.c.l.b16 %v369
    %v556 = vunpack.c.h.b16 %v369
    %v557 = vunpack.c.l.b16 %v370
    %v558 = vunpack.c.h.b16 %v370
    %v559 = vunpack.c.l.b16 %v371
    %v560 = vunpack.c.h.b16 %v371
    %v561 = vunpack.c.l.b16 %v372
    %v562 = vunpack.c.h.b16 %v372
    %v563 = vunpack.c.l.b16 %v373
    %v564 = vunpack.c.h.b16 %v373
    %v565 = vunpack.c.l.b16 %v374
    %v566 = vunpack.c.h.b16 %v374
    %v567 = vunpack.c.l.b16 %v375
    %v568 = vunpack.c.h.b16 %v375
    %v569 = vunpack.c.l.b16 %v376
    %v570 = vunpack.c.h.b16 %v376
    %v571 = vunpack.c.l.b16 %v377
    %v572 = vunpack.c.h.b16 %v377
    %v573 = vunpack.c.l.b16 %v378
    %v574 = vunpack.c.h.b16 %v378
    %v575 = vunpack.c.l.b16 %v379
    %v576 = vunpack.c.h.b16 %v379
    %v577 = vunpack.c.l.b16 %v380
    %v578 = vunpack.c.h.b16 %v380
    %v579 = vunpack.c.l.b16 %v381
    %v580 = vunpack.c.h.b16 %v381
    %v581 = vunpack.c.l.b16 %v382
    %v582 = vunpack.c.h.b16 %v382
    %v583 = vunpack.c.l.b16 %v383
    %v584 = vunpack.c.h.b16 %v383
    %v585 = vunpack.c.l.b16 %v384
    %v586 = vunpack.c.h.b16 %v384
    %v587 = vunpack.c.l.b16 %v385
    %v588 = vunpack.c.h.b16 %v385
    %v589 = vunpack.c.l.b16 %v386
    %v590 = vunpack.c.h.b16 %v386
    %v591 = vunpack.c.l.b16 %v387
    %v592 = vunpack.c.h.b16 %v387
    %v593 = vunpack.c.l.b16 %v388
    %v594 = vunpack.c.h.b16 %v388
    %v595 = vunpack.c.l.b16 %v389
    %v596 = vunpack.c.h.b16 %v389
    %v597 = vunpack.c.l.b16 %v390
    %v598 = vunpack.c.h.b16 %v390
    %v599 = vunpack.c.l.b16 %v391
    %v600 = vunpack.c.h.b16 %v391
    %v601 = vunpack.c.l.b16 %v392
    %v602 = vunpack.c.h.b16 %v392
    %v603 = vunpack.c.l.b16 %v393
    %v604 = vunpack.c.h.b16 %v393
    %v605 = vunpack.c.l.b16 %v394
    %v606 = vunpack.c.h.b16 %v394
    %v607 = vunpack.c.l.b16 %v395
    %v608 = vunpack.c.h.b16 %v395
    %v609 = vunpack.c.l.b16 %v396
    %v610 = vunpack.c.h.b16 %v396
    %v611 = vpack.c.b16 %v487, %v483
    %v612 = vpack.c.b16 %v488, %v484
    %v613 = vpack.c.b16 %v489, %v485
    %v614 = vpack.c.b16 %v490, %v486
    %v615 = vpack.c.b16 %v495, %v491
    %v616 = vpack.c.b16 %v496, %v492
    %v617 = vpack.c.b16 %v497, %v493
    %v618 = vpack.c.b16 %v498, %v494
    %v619 = vpack.c.b16 %v503, %v499
    %v620 = vpack.c.b16 %v504, %v500
    %v621 = vpack.c.b16 %v505, %v501
    %v622 = vpack.c.b16 %v506, %v502
    %v623 = vpack.c.b16 %v511, %v507
    %v624 = vpack.c.b16 %v512, %v508
    %v625 = vpack.c.b16 %v513, %v509
    %v626 = vpack.c.b16 %v514, %v510
    %v627 = vpack.c.b16 %v519, %v515
    %v628 = vpack.c.b16 %v520, %v516
    %v629 = vpack.c.b16 %v521, %v517
    %v630 = vpack.c.b16 %v522, %v518
    %v631 = vpack.c.b16 %v527, %v523
    %v632 = vpack.c.b16 %v528, %v524
    %v633 = vpack.c.b16 %v529, %v525
    %v634 = vpack.c.b16 %v530, %v526
    %v635 = vpack.c.b16 %v535, %v531
    %v636 = vpack.c.b16 %v536, %v532
    %v637 = vpack.c.b16 %v537, %v533
    %v638 = vpack.c.b16 %v538, %v534
    %v639 = vpack.c.b16 %v543, %v539
    %v640 = vpack.c.b16 %v544, %v540
    %v641 = vpack.c.b16 %v545, %v541
    %v642 = vpack.c.b16 %v546, %v542
    %v643 = vpack.c.b16 %v551, %v547
    %v644 = vpack.c.b16 %v552, %v548
    %v645 = vpack.c.b16 %v553, %v549
    %v646 = vpack.c.b16 %v554, %v550
    %v647 = vpack.c.b16 %v559, %v555
    %v648 = vpack.c.b16 %v560, %v556
    %v649 = vpack.c.b16 %v561, %v557
    %v650 = vpack.c.b16 %v562, %v558
    %v651 = vpack.c.b16 %v567, %v563
    %v652 = vpack.c.b16 %v568, %v564
    %v653 = vpack.c.b16 %v569, %v565
    %v654 = vpack.c.b16 %v570, %v566
    %v655 = vpack.c.b16 %v575, %v571
    %v656 = vpack.c.b16 %v576, %v572
    %v657 = vpack.c.b16 %v577, %v573
    %v658 = vpack.c.b16 %v578, %v574
    %v659 = vpack.c.b16 %v583, %v579
    %v660 = vpack.c.b16 %v584, %v580
    %v661 = vpack.c.b16 %v585, %v581
    %v662 = vpack.c.b16 %v586, %v582
    %v663 = vpack.c.b16 %v591, %v587
    %v664 = vpack.c.b16 %v592, %v588
    %v665 = vpack.c.b16 %v593, %v589
    %v666 = vpack.c.b16 %v594, %v590
    %v667 = vpack.c.b16 %v599, %v595
    %v668 = vpack.c.b16 %v600, %v596
    %v669 = vpack.c.b16 %v601, %v597
    %v670 = vpack.c.b16 %v602, %v598
    %v671 = vpack.c.b16 %v607, %v603
    %v672 = vpack.c.b16 %v608, %v604
    %v673 = vpack.c.b16 %v609, %v605
    %v674 = vpack.c.b16 %v610, %v606
    %739 = vmatprep.subr.bf16.mxu0 %v612
    %740 = vmatpush1.bf16.msra.mxu0 %v611
    %741 = vmatprep.subr.bf16.mxu0 %v616
    %742 = vmatpush1.bf16.msra.mxu0 %v615
    %743 = vmatprep.subr.bf16.mxu0 %v620
    %744 = vmatpush1.bf16.msra.mxu0 %v619
    %745 = vmatprep.subr.bf16.mxu0 %v624
    %746 = vmatpush1.bf16.msra.mxu0 %v623
    %747 = vmatprep.subr.bf16.mxu0 %v628
    %748 = vmatpush1.bf16.msra.mxu0 %v627
    %749 = vmatprep.subr.bf16.mxu0 %v632
    %750 = vmatpush1.bf16.msra.mxu0 %v631
    %751 = vmatprep.subr.bf16.mxu0 %v636
    %752 = vmatpush1.bf16.msra.mxu0 %v635
    %753 = vmatprep.subr.bf16.mxu0 %v640
    %754 = vmatpush1.bf16.msra.mxu0 %v639
    %755 = vmatprep.subr.bf16.mxu0 %v644
    %756 = vmatpush1.bf16.msra.mxu0 %v643
    %757 = vmatprep.subr.bf16.mxu0 %v648
    %758 = vmatpush1.bf16.msra.mxu0 %v647
    %759 = vmatprep.subr.bf16.mxu0 %v652
    %760 = vmatpush1.bf16.msra.mxu0 %v651
    %761 = vmatprep.subr.bf16.mxu0 %v656
    %762 = vmatpush1.bf16.msra.mxu0 %v655
    %763 = vmatprep.subr.bf16.mxu0 %v660
    %764 = vmatpush1.bf16.msra.mxu0 %v659
    %765 = vmatprep.subr.bf16.mxu0 %v664
    %766 = vmatpush1.bf16.msra.mxu0 %v663
    %767 = vmatprep.subr.bf16.mxu0 %v668
    %768 = vmatpush1.bf16.msra.mxu0 %v667
    %769 = vmatprep.subr.bf16.mxu0 %v672
    %770 = vmatpush1.bf16.msra.mxu0 %v671
    %771 = vmatprep.mubr.bf16.mxu0 %v332
    %772 = vmatmul.mubr.bf16.gmra.mrb[0].mxu0 %v331
    %v773 = vpop.f32.mrb[0].mxu0
    %v774 = vadd.f32 %v402, %v773
    %v775 = vpop.f32.mrb[0].mxu0
    %v776 = vadd.f32 %v406, %v775
    %v777 = vpop.f32.mrb[0].mxu0
    %v778 = vpop.f32.mrb[0].mxu0
    %779 = vdwg.mxu0
    %780 = vmatprep.subr.bf16.mxu0 %v614
    %781 = vmatpush1.bf16.msra.mxu0 %v613
    %782 = vmatprep.subr.bf16.mxu0 %v618
    %783 = vmatpush1.bf16.msra.mxu0 %v617
    %784 = vmatprep.subr.bf16.mxu0 %v622
    %785 = vmatpush1.bf16.msra.mxu0 %v621
    %786 = vmatprep.subr.bf16.mxu0 %v626
    %787 = vmatpush1.bf16.msra.mxu0 %v625
    %788 = vmatprep.subr.bf16.mxu0 %v630
    %789 = vmatpush1.bf16.msra.mxu0 %v629
    %790 = vmatprep.subr.bf16.mxu0 %v634
    %791 = vmatpush1.bf16.msra.mxu0 %v633
    %792 = vmatprep.subr.bf16.mxu0 %v638
    %793 = vmatpush1.bf16.msra.mxu0 %v637
    %794 = vmatprep.subr.bf16.mxu0 %v642
    %795 = vmatpush1.bf16.msra.mxu0 %v641
    %796 = vmatprep.subr.bf16.mxu0 %v646
    %797 = vmatpush1.bf16.msra.mxu0 %v645
    %798 = vmatprep.subr.bf16.mxu0 %v650
    %799 = vmatpush1.bf16.msra.mxu0 %v649
    %800 = vmatprep.subr.bf16.mxu0 %v654
    %801 = vmatpush1.bf16.msra.mxu0 %v653
    %802 = vmatprep.subr.bf16.mxu0 %v658
    %803 = vmatpush1.bf16.msra.mxu0 %v657
    %804 = vmatprep.subr.bf16.mxu0 %v662
    %805 = vmatpush1.bf16.msra.mxu0 %v661
    %806 = vmatprep.subr.bf16.mxu0 %v666
    %807 = vmatpush1.bf16.msra.mxu0 %v665
    %808 = vmatprep.subr.bf16.mxu0 %v670
    %809 = vmatpush1.bf16.msra.mxu0 %v669
    %810 = vmatprep.subr.bf16.mxu0 %v674
    %811 = vmatpush1.bf16.msra.mxu0 %v673
    %812 = vmatprep.mubr.bf16.mxu0 %v332
    %813 = vmatmul.mubr.bf16.gmra.mrb[0].mxu0 %v331
    %v814 = vpop.f32.mrb[0].mxu0
    %v815 = vadd.f32 %v410, %v814
    %v816 = vpop.f32.mrb[0].mxu0
    %v817 = vadd.f32 %v414, %v816
    %v818 = vpop.f32.mrb[0].mxu0
    %v819 = vpop.f32.mrb[0].mxu0
    %820 = vdwg.mxu0
    %v821 = vmax.f32 %v774, 0.0
    %v822 = vmax.f32 %v776, 0.0
    %v823 = vmax.f32 %v815, 0.0
    %v824 = vmax.f32 %v817, 0.0
    %v825 = vpack.c.bf16 %v821, %v821
    %v826 = vpack.c.bf16 %v822, %v822
    %v827 = vpack.c.bf16 %v823, %v823
    %v828 = vpack.c.bf16 %v824, %v824
    %v829 = vld [vmem:[#allocation10] sm:$0xf]
    %v830 = vld [vmem:[#allocation10 + $0x4] sm:$0xf]
    %v831 = vld [vmem:[#allocation10 + $0x8] sm:$0xf]
    %v832 = vld [vmem:[#allocation10 + $0xc] sm:$0xf]
    %v833 = vld [vmem:[#allocation10 + $0x10] sm:$0xf]
    %v834 = vld [vmem:[#allocation10 + $0x14] sm:$0xf]
    %v835 = vld [vmem:[#allocation10 + $0x18] sm:$0xf]
    %v836 = vld [vmem:[#allocation10 + $0x1c] sm:$0xf]
    %v837 = vld [vmem:[#allocation10 + $0x20] sm:$0xf]
    %v838 = vld [vmem:[#allocation10 + $0x24] sm:$0xf]
    %v839 = vld [vmem:[#allocation10 + $0x28] sm:$0xf]
    %v840 = vld [vmem:[#allocation10 + $0x2c] sm:$0xf]
    %v841 = vld [vmem:[#allocation10 + $0x30] sm:$0xf]
    %v842 = vld [vmem:[#allocation10 + $0x34] sm:$0xf]
    %v843 = vld [vmem:[#allocation10 + $0x38] sm:$0xf]
    %v844 = vld [vmem:[#allocation10 + $0x3c] sm:$0xf]
    %v845 = vld [vmem:[#allocation10 + $0x40] sm:$0xf]
    %v846 = vld [vmem:[#allocation10 + $0x44] sm:$0xf]
    %v847 = vld [vmem:[#allocation10 + $0x48] sm:$0xf]
    %v848 = vld [vmem:[#allocation10 + $0x4c] sm:$0xf]
    %v849 = vld [vmem:[#allocation10 + $0x50] sm:$0xf]
    %v850 = vld [vmem:[#allocation10 + $0x54] sm:$0xf]
    %v851 = vld [vmem:[#allocation10 + $0x58] sm:$0xf]
    %v852 = vld [vmem:[#allocation10 + $0x5c] sm:$0xf]
    %v853 = vld [vmem:[#allocation10 + $0x60] sm:$0xf]
    %v854 = vld [vmem:[#allocation10 + $0x64] sm:$0xf]
    %v855 = vld [vmem:[#allocation10 + $0x68] sm:$0xf]
    %v856 = vld [vmem:[#allocation10 + $0x6c] sm:$0xf]
    %v857 = vld [vmem:[#allocation10 + $0x70] sm:$0xf]
    %v858 = vld [vmem:[#allocation10 + $0x74] sm:$0xf]
    %v859 = vld [vmem:[#allocation10 + $0x78] sm:$0xf]
    %v860 = vld [vmem:[#allocation10 + $0x7c] sm:$0xf]
    %v861 = vld [vmem:[#allocation10 + $0x80] sm:$0xf]
    %v862 = vld [vmem:[#allocation10 + $0x84] sm:$0xf]
    %v863 = vld [vmem:[#allocation10 + $0x88] sm:$0xf]
    %v864 = vld [vmem:[#allocation10 + $0x8c] sm:$0xf]
    %v865 = vld [vmem:[#allocation10 + $0x90] sm:$0xf]
    %v866 = vld [vmem:[#allocation10 + $0x94] sm:$0xf]
    %v867 = vld [vmem:[#allocation10 + $0x98] sm:$0xf]
    %v868 = vld [vmem:[#allocation10 + $0x9c] sm:$0xf]
    %v869 = vld [vmem:[#allocation10 + $0xa0] sm:$0xf]
    %v870 = vld [vmem:[#allocation10 + $0xa4] sm:$0xf]
    %v871 = vld [vmem:[#allocation10 + $0xa8] sm:$0xf]
    %v872 = vld [vmem:[#allocation10 + $0xac] sm:$0xf]
    %v873 = vld [vmem:[#allocation10 + $0xb0] sm:$0xf]
    %v874 = vld [vmem:[#allocation10 + $0xb4] sm:$0xf]
    %v875 = vld [vmem:[#allocation10 + $0xb8] sm:$0xf]
    %v876 = vld [vmem:[#allocation10 + $0xbc] sm:$0xf]
    %v877 = vld [vmem:[#allocation10 + $0xc0] sm:$0xf]
    %v878 = vld [vmem:[#allocation10 + $0xc4] sm:$0xf]
    %v879 = vld [vmem:[#allocation10 + $0xc8] sm:$0xf]
    %v880 = vld [vmem:[#allocation10 + $0xcc] sm:$0xf]
    %v881 = vld [vmem:[#allocation10 + $0xd0] sm:$0xf]
    %v882 = vld [vmem:[#allocation10 + $0xd4] sm:$0xf]
    %v883 = vld [vmem:[#allocation10 + $0xd8] sm:$0xf]
    %v884 = vld [vmem:[#allocation10 + $0xdc] sm:$0xf]
    %v885 = vld [vmem:[#allocation10 + $0xe0] sm:$0xf]
    %v886 = vld [vmem:[#allocation10 + $0xe4] sm:$0xf]
    %v887 = vld [vmem:[#allocation10 + $0xe8] sm:$0xf]
    %v888 = vld [vmem:[#allocation10 + $0xec] sm:$0xf]
    %v889 = vld [vmem:[#allocation10 + $0xf0] sm:$0xf]
    %v890 = vld [vmem:[#allocation10 + $0xf4] sm:$0xf]
    %v891 = vld [vmem:[#allocation10 + $0xf8] sm:$0xf]
    %v892 = vld [vmem:[#allocation10 + $0xfc] sm:$0xf]
    %v893 = vld [vmem:[#allocation11] sm:$0x1]
    %v895 = vlaneseq
    %v896 = vshrl.u32 %v895, 7
    %v897 = vsub.s32 0, %v896
    %v898 = vrot.slane %v893, %v897
    %v964 = vunpack.c.l.b16 %v829
    %v965 = vunpack.c.l.b16 %v830
    %v966 = vunpack.c.l.b16 %v831
    %v967 = vunpack.c.l.b16 %v832
    %v968 = vunpack.c.l.b16 %v833
    %v969 = vunpack.c.l.b16 %v834
    %v970 = vunpack.c.l.b16 %v835
    %v971 = vunpack.c.l.b16 %v836
    %v972 = vunpack.c.l.b16 %v837
    %v973 = vunpack.c.l.b16 %v838
    %v974 = vunpack.c.l.b16 %v839
    %v975 = vunpack.c.l.b16 %v840
    %v976 = vunpack.c.l.b16 %v841
    %v977 = vunpack.c.l.b16 %v842
    %v978 = vunpack.c.l.b16 %v843
    %v979 = vunpack.c.l.b16 %v844
    %v980 = vunpack.c.l.b16 %v845
    %v981 = vunpack.c.l.b16 %v846
    %v982 = vunpack.c.l.b16 %v847
    %v983 = vunpack.c.l.b16 %v848
    %v984 = vunpack.c.l.b16 %v849
    %v985 = vunpack.c.l.b16 %v850
    %v986 = vunpack.c.l.b16 %v851
    %v987 = vunpack.c.l.b16 %v852
    %v988 = vunpack.c.l.b16 %v853
    %v989 = vunpack.c.l.b16 %v854
    %v990 = vunpack.c.l.b16 %v855
    %v991 = vunpack.c.l.b16 %v856
    %v992 = vunpack.c.l.b16 %v857
    %v993 = vunpack.c.l.b16 %v858
    %v994 = vunpack.c.l.b16 %v859
    %v995 = vunpack.c.l.b16 %v860
    %v996 = vunpack.c.l.b16 %v861
    %v997 = vunpack.c.l.b16 %v862
    %v998 = vunpack.c.l.b16 %v863
    %v999 = vunpack.c.l.b16 %v864
    %v1000 = vunpack.c.l.b16 %v865
    %v1001 = vunpack.c.l.b16 %v866
    %v1002 = vunpack.c.l.b16 %v867
    %v1003 = vunpack.c.l.b16 %v868
    %v1004 = vunpack.c.l.b16 %v869
    %v1005 = vunpack.c.l.b16 %v870
    %v1006 = vunpack.c.l.b16 %v871
    %v1007 = vunpack.c.l.b16 %v872
    %v1008 = vunpack.c.l.b16 %v873
    %v1009 = vunpack.c.l.b16 %v874
    %v1010 = vunpack.c.l.b16 %v875
    %v1011 = vunpack.c.l.b16 %v876
    %v1012 = vunpack.c.l.b16 %v877
    %v1013 = vunpack.c.l.b16 %v878
    %v1014 = vunpack.c.l.b16 %v879
    %v1015 = vunpack.c.l.b16 %v880
    %v1016 = vunpack.c.l.b16 %v881
    %v1017 = vunpack.c.l.b16 %v882
    %v1018 = vunpack.c.l.b16 %v883
    %v1019 = vunpack.c.l.b16 %v884
    %v1020 = vunpack.c.l.b16 %v885
    %v1021 = vunpack.c.l.b16 %v886
    %v1022 = vunpack.c.l.b16 %v887
    %v1023 = vunpack.c.l.b16 %v888
    %v1024 = vunpack.c.l.b16 %v889
    %v1025 = vunpack.c.l.b16 %v890
    %v1026 = vunpack.c.l.b16 %v891
    %v1027 = vunpack.c.l.b16 %v892
    %v1028 = vpack.c.b16 %v965, %v964
    %v1029 = vpack.c.b16 %v967, %v966
    %v1030 = vpack.c.b16 %v969, %v968
    %v1031 = vpack.c.b16 %v971, %v970
    %v1032 = vpack.c.b16 %v973, %v972
    %v1033 = vpack.c.b16 %v975, %v974
    %v1034 = vpack.c.b16 %v977, %v976
    %v1035 = vpack.c.b16 %v979, %v978
    %v1036 = vpack.c.b16 %v981, %v980
    %v1037 = vpack.c.b16 %v983, %v982
    %v1038 = vpack.c.b16 %v985, %v984
    %v1039 = vpack.c.b16 %v987, %v986
    %v1040 = vpack.c.b16 %v989, %v988
    %v1041 = vpack.c.b16 %v991, %v990
    %v1042 = vpack.c.b16 %v993, %v992
    %v1043 = vpack.c.b16 %v995, %v994
    %v1044 = vpack.c.b16 %v997, %v996
    %v1045 = vpack.c.b16 %v999, %v998
    %v1046 = vpack.c.b16 %v1001, %v1000
    %v1047 = vpack.c.b16 %v1003, %v1002
    %v1048 = vpack.c.b16 %v1005, %v1004
    %v1049 = vpack.c.b16 %v1007, %v1006
    %v1050 = vpack.c.b16 %v1009, %v1008
    %v1051 = vpack.c.b16 %v1011, %v1010
    %v1052 = vpack.c.b16 %v1013, %v1012
    %v1053 = vpack.c.b16 %v1015, %v1014
    %v1054 = vpack.c.b16 %v1017, %v1016
    %v1055 = vpack.c.b16 %v1019, %v1018
    %v1056 = vpack.c.b16 %v1021, %v1020
    %v1057 = vpack.c.b16 %v1023, %v1022
    %v1058 = vpack.c.b16 %v1025, %v1024
    %v1059 = vpack.c.b16 %v1027, %v1026
    %1092 = vmatprep.subr.bf16.mxu0 0
    %1093 = vmatpush1.bf16.msra.mxu0 %v1028
    %1094 = vmatprep.subr.bf16.mxu0 0
    %1095 = vmatpush1.bf16.msra.mxu0 %v1029
    %1096 = vmatprep.subr.bf16.mxu0 0
    %1097 = vmatpush1.bf16.msra.mxu0 %v1030
    %1098 = vmatprep.subr.bf16.mxu0 0
    %1099 = vmatpush1.bf16.msra.mxu0 %v1031
    %1100 = vmatprep.subr.bf16.mxu0 0
    %1101 = vmatpush1.bf16.msra.mxu0 %v1032
    %1102 = vmatprep.subr.bf16.mxu0 0
    %1103 = vmatpush1.bf16.msra.mxu0 %v1033
    %1104 = vmatprep.subr.bf16.mxu0 0
    %1105 = vmatpush1.bf16.msra.mxu0 %v1034
    %1106 = vmatprep.subr.bf16.mxu0 0
    %1107 = vmatpush1.bf16.msra.mxu0 %v1035
    %1108 = vmatprep.subr.bf16.mxu0 0
    %1109 = vmatpush1.bf16.msra.mxu0 %v1036
    %1110 = vmatprep.subr.bf16.mxu0 0
    %1111 = vmatpush1.bf16.msra.mxu0 %v1037
    %1112 = vmatprep.subr.bf16.mxu0 0
    %1113 = vmatpush1.bf16.msra.mxu0 %v1038
    %1114 = vmatprep.subr.bf16.mxu0 0
    %1115 = vmatpush1.bf16.msra.mxu0 %v1039
    %1116 = vmatprep.subr.bf16.mxu0 0
    %1117 = vmatpush1.bf16.msra.mxu0 %v1040
    %1118 = vmatprep.subr.bf16.mxu0 0
    %1119 = vmatpush1.bf16.msra.mxu0 %v1041
    %1120 = vmatprep.subr.bf16.mxu0 0
    %1121 = vmatpush1.bf16.msra.mxu0 %v1042
    %1122 = vmatprep.subr.bf16.mxu0 0
    %1123 = vmatpush1.bf16.msra.mxu0 %v1043
    %1124 = vmatprep.mubr.bf16.mxu0 %v826
    %1125 = vmatmul.mubr.bf16.gmra.mrb[0].mxu0 %v825
    %v1126 = vpop.f32.mrb[0].mxu0
    %v1127 = vadd.f32 %v898, %v1126
    %v1128 = vpop.f32.mrb[0].mxu0
    %v1129 = vpop.f32.mrb[0].mxu0
    %v1130 = vpop.f32.mrb[0].mxu0
    %1131 = vdwg.mxu0
    %1132 = vmatprep.subr.bf16.mxu0 0
    %1133 = vmatpush1.bf16.msra.mxu0 %v1044
    %1134 = vmatprep.subr.bf16.mxu0 0
    %1135 = vmatpush1.bf16.msra.mxu0 %v1045
    %1136 = vmatprep.subr.bf16.mxu0 0
    %1137 = vmatpush1.bf16.msra.mxu0 %v1046
    %1138 = vmatprep.subr.bf16.mxu0 0
    %1139 = vmatpush1.bf16.msra.mxu0 %v1047
    %1140 = vmatprep.subr.bf16.mxu0 0
    %1141 = vmatpush1.bf16.msra.mxu0 %v1048
    %1142 = vmatprep.subr.bf16.mxu0 0
    %1143 = vmatpush1.bf16.msra.mxu0 %v1049
    %1144 = vmatprep.subr.bf16.mxu0 0
    %1145 = vmatpush1.bf16.msra.mxu0 %v1050
    %1146 = vmatprep.subr.bf16.mxu0 0
    %1147 = vmatpush1.bf16.msra.mxu0 %v1051
    %1148 = vmatprep.subr.bf16.mxu0 0
    %1149 = vmatpush1.bf16.msra.mxu0 %v1052
    %1150 = vmatprep.subr.bf16.mxu0 0
    %1151 = vmatpush1.bf16.msra.mxu0 %v1053
    %1152 = vmatprep.subr.bf16.mxu0 0
    %1153 = vmatpush1.bf16.msra.mxu0 %v1054
    %1154 = vmatprep.subr.bf16.mxu0 0
    %1155 = vmatpush1.bf16.msra.mxu0 %v1055
    %1156 = vmatprep.subr.bf16.mxu0 0
    %1157 = vmatpush1.bf16.msra.mxu0 %v1056
    %1158 = vmatprep.subr.bf16.mxu0 0
    %1159 = vmatpush1.bf16.msra.mxu0 %v1057
    %1160 = vmatprep.subr.bf16.mxu0 0
    %1161 = vmatpush1.bf16.msra.mxu0 %v1058
    %1162 = vmatprep.subr.bf16.mxu0 0
    %1163 = vmatpush1.bf16.msra.mxu0 %v1059
    %1164 = vmatprep.mubr.bf16.mxu0 %v828
    %1165 = vmatmul.mubr.bf16.gmra.mrb[0].mxu0 %v827
    %v1166 = vpop.f32.mrb[0].mxu0
    %v1167 = vadd.f32 %v1127, %v1166
    %v1168 = vpop.f32.mrb[0].mxu0
    %v1169 = vpop.f32.mrb[0].mxu0
    %v1170 = vpop.f32.mrb[0].mxu0
    %1171 = vdwg.mxu0
    %1172 = vst [vmem:[#allocation13] sm:$0xff] %v1167
    // Predicated region
    $region62: #{_generator_forward_padded.1} parent=1 // pred_check
      _
    $region63: #{_generator_forward_padded.1} parent=1 // pred_check_branch
      %1174 = sbr.rel (0) target = $region65
    $region64: #{_generator_forward_padded.1} parent=1 // pred_region
      %s1176 = ssub.s32 128, 128
      %1177 = vsyncadd [#allocation4], %s1176
      %s1179 = sshll.u32 [#allocation13], 4
      %s1180 = int_to_ptr.vmem [resolvable:$true] %s1179
      %1182 = dma.vmem_to_hbm [thread:$0]  %s1180, 128, %s9, [#allocation4]
    $region65: #{_generator_forward_padded.1} parent=1 // pred_fallthru
      _
    // Predicated region
    $region66: #{_generator_forward_padded.1} parent=1 // pred_check
      _
    $region67: #{_generator_forward_padded.1} parent=1 // pred_check_branch
      %1184 = sbr.rel (0) target = $region69
    $region68: #{_generator_forward_padded.1} parent=1 // pred_region
      %1185 = dma.done [#allocation4], 128
    $region69: #{_generator_forward_padded.1} parent=1 // pred_fallthru
      _
    %1186 = vsyncpa [#allocation3], 1
    %1187 = vsyncpa [#allocation6], 1
    %1188 = vsyncpa [#allocation9], 1
    %1189 = vsyncpa [#allocation12], 1
    %1190 = vsyncpa [#allocation4], 1

</llo_original>
